<compile_context>
chip_gen: v5e
topology: v5e:2x2
jax: 0.10.0
libtpu: 0.0.40
codegen_flags: <defaults>
</compile_context>

<pallas_src>
import math

import jax
import jax.numpy as jnp
from jax.experimental import pallas as pl
from jax.experimental.pallas import tpu as pltpu


# ---------------- Wav2FFT constructor-equivalent configuration --------------
FS = 8000              # sample rate (small so the frame is short)
FRAME_LENGTH_MS = 8    # -> N_WIN = 64 samples
FRAME_SHIFT_MS = 4     # -> N_SHIFT = 32 samples
FFT_LENGTH = 128       # pad_length for Wav2Win, rfft length
PREEMPH = 0.97
REMOVE_DC = True
WINDOW_TYPE = "povey"
DITHER = 0.0           # TODO(synk): dither omitted (0.0) for determinism; could
                       #             be added with pltpu.prng_random_bits.
SNIP_EDGES = True
USE_ENERGY = True
RAW_ENERGY = True
ENERGY_FLOOR = 0.0     # Wav2FFT always passes energy_floor=0 to Wav2Win

N_WIN = int(math.floor(FRAME_LENGTH_MS * FS / 1000))    # 64
N_SHIFT = int(math.floor(FRAME_SHIFT_MS * FS / 1000))   # 32
N_FREQ = FFT_LENGTH // 2 + 1                            # 65
N_OUT = 2 * N_FREQ                                      # 130 interleaved re/im columns
MAX_ROW_TILE = 2048                                     # << VMEM on v5e/v6e/v7x
assert FFT_LENGTH >= N_WIN
assert N_WIN == 2 * N_SHIFT       # gather-free chunk framing relies on this


def _round_up(x, m):
    return (x + m - 1) // m * m


def _choose_row_tiling(rows, max_tile=MAX_ROW_TILE):
    """Row-tile selection: minimal (16-row) padding, tile divides the padded
    row count (no wasted full tiles), and >= 2 grid steps when affordable so
    v7x's two TensorCores both get work under dimension_semantics=parallel."""
    rp = _round_up(rows, 16)
    divs = [d for d in range(16, min(max_tile, rp) + 1, 16) if rp % d == 0]
    tm = max(divs)
    if tm == rp and rp >= 32:
        smaller = [d for d in divs if d < rp]
        if smaller and max(smaller) * 4 >= rp:      # don't shatter into slivers
            tm = max(smaller)
    if tm < 128 and rows > 1024:
        # pathological divisor structure (e.g. 16 * large prime): accept up to
        # 127 rows of padding to recover fat, evenly dividing tiles.
        rp = _round_up(rows, 128)
        tm = max(d for d in range(128, min(max_tile, rp) + 1, 128) if rp % d == 0)
    return rp, tm


# ---------------- deterministic "parameters" (window + fused DFT weight) ----
def povey_window(n):
    a = 2.0 * math.pi / n
    t = jnp.arange(n, dtype=jnp.float32)
    return (0.5 - 0.5 * jnp.cos(a * t)) ** 0.85


def dft_weights():
    """Window-folded rfft weights with interleaved re/im columns, hi/lo-split.

    Column 2k   = win * cos(2*pi*n*k/FFT)   (real bin k)
    Column 2k+1 = win * -sin(2*pi*n*k/FFT)  (imag bin k)
    so `frames @ W` already has torch.view_as_real(rfft(.)) memory layout.
    Each bf16 part is duplicated along K so the kernel LHS [f_hi | f_lo]
    (K = 2*N_WIN) multiplies it in one dot; W_hi + W_lo reconstructs the f32
    weight, and f_hi + f_lo the f32 frames, inside the f32 MXU accumulator.
    """
    win = povey_window(N_WIN)
    n = jnp.arange(N_WIN, dtype=jnp.float32)[:, None]
    k = jnp.arange(N_FREQ, dtype=jnp.float32)[None, :]
    ang = 2.0 * math.pi * n * k / float(FFT_LENGTH)
    w_re = win[:, None] * jnp.cos(ang)                     # (N_WIN, N_FREQ)
    w_im = win[:, None] * (-jnp.sin(ang))                  # (N_WIN, N_FREQ)
    w = jnp.stack([w_re, w_im], axis=-1).reshape(N_WIN, N_OUT)
    w_hi = w.astype(jnp.bfloat16)
    w_lo = (w - w_hi.astype(jnp.float32)).astype(jnp.bfloat16)
    return (jnp.concatenate([w_hi, w_hi], axis=0),         # (2*N_WIN, N_OUT)
            jnp.concatenate([w_lo, w_lo], axis=0))


# ---------------- framing helper (used by the pure-JAX reference) -----------
def frame_signal(x, n_win, n_shift):
    """snip_edges=True framing (gather-free path when n_win % n_shift == 0)."""
    b, t = x.shape
    m = 1 + (t - n_win) // n_shift
    if n_win % n_shift == 0:
        r = n_win // n_shift
        n_chunks = t // n_shift
        chunks = x[:, :n_chunks * n_shift].reshape(b, n_chunks, n_shift)
        parts = [chunks[:, j:j + m] for j in range(r)]
        return jnp.concatenate(parts, axis=-1)              # (b, m, n_win)
    idx = jnp.arange(m)[:, None] * n_shift + jnp.arange(n_win)[None, :]
    return x[:, idx]


# ---------------- Pallas kernel ----------------------------------------------
def wav2fft_kernel(lhs_ref, loge_ref, w_hi_ref, w_lo_ref, out_ref):
    # lhs:  (TM, 2*N_WIN) bf16 = [frames_hi | frames_lo]
    # w_hi: (2*N_WIN, N_OUT) bf16 = [[W_hi], [W_hi]]   (interleaved re/im cols)
    # w_lo: (2*N_WIN, N_OUT) bf16 = [[W_lo], [W_lo]]
    # Two K=128 bf16 dots; the hi/lo recombination happens in the f32 MXU
    # accumulator (no wide-N intermediate, no f32 VPU slab add).
    acc = jnp.dot(lhs_ref[...], w_hi_ref[...], preferred_element_type=jnp.float32)
    acc = acc + jnp.dot(lhs_ref[...], w_lo_ref[...], preferred_element_type=jnp.float32)
    # use_energy: raw-frame log energy replaces the real part of the DC bin
    # (interleaved column 0); done in-kernel to avoid a post-pass on the output.
    col = jax.lax.broadcasted_iota(jnp.int32, acc.shape, 1)
    out_ref[...] = jnp.where(col == 0, loge_ref[...], acc)


# ---------------- wrapper -----------------------------------------------------
def wav2fft(x):
    x = x.astype(jnp.float32)

    # (dither == 0.0 -> skipped)
    if REMOVE_DC:
        x = x - jnp.mean(x, axis=1, keepdims=True)

    B, T = x.shape
    M = 1 + (T - N_WIN) // N_SHIFT          # snip_edges=True frame count
    C = T // N_SHIFT                        # whole 32-sample chunks (M + 1 <= C)
    rows = B * M

    # raw_energy=True: log energy of the un-preemphasized, un-windowed frames,
    # built from non-overlapping chunk energies (no 2x-overlap frames_raw
    # materialization).  energy_floor == 0.0 -> no flooring.
    ce = jnp.sum(jnp.square(x[:, :C * N_SHIFT].reshape(B, C, N_SHIFT)), axis=-1)
    log_e = jnp.log(ce[:, :M] + ce[:, 1:M + 1] + 1e-15)          # (B, M)

    # preemphasis with replicate left-pad: y[n] = x[n] - c*x[n-1], x[-1] := x[0]
    x_off = jnp.concatenate([x[:, :1], x[:, :-1]], axis=1)
    x_pre = x - PREEMPH * x_off

    # gather-free framing (N_WIN == 2*N_SHIFT): frame m = chunk m ++ chunk m+1
    chunks = x_pre[:, :C * N_SHIFT].reshape(B, C, N_SHIFT)
    frames = jnp.concatenate([chunks[:, :M], chunks[:, 1:M + 1]], axis=-1)
    frames = frames.reshape(rows, N_WIN)                         # (rows, 64) f32

    # hi/lo bf16 split (window is folded into the DFT weight); recombined in
    # the MXU accumulator inside the kernel.
    f_hi = frames.astype(jnp.bfloat16)
    f_lo = (frames - f_hi.astype(jnp.float32)).astype(jnp.bfloat16)
    lhs = jnp.concatenate([f_hi, f_lo], axis=-1)                 # (rows, 128) bf16

    rows_padded, tm = _choose_row_tiling(rows)
    loge_col = log_e.reshape(rows, 1)
    if rows_padded != rows:
        pad = rows_padded - rows
        lhs = jnp.pad(lhs, ((0, pad), (0, 0)))
        loge_col = jnp.pad(loge_col, ((0, pad), (0, 0)))

    w_hi, w_lo = dft_weights()                                   # (128, 130) bf16 each

    out = pl.pallas_call(
        wav2fft_kernel,
        out_shape=jax.ShapeDtypeStruct((rows_padded, N_OUT), jnp.float32),
        grid=(rows_padded // tm,),
        in_specs=[
            pl.BlockSpec((tm, 2 * N_WIN), lambda i: (i, 0)),      # split frames
            pl.BlockSpec((tm, 1), lambda i: (i, 0)),              # raw log energy
            pl.BlockSpec((2 * N_WIN, N_OUT), lambda i: (0, 0)),   # W_hi (broadcast)
            pl.BlockSpec((2 * N_WIN, N_OUT), lambda i: (0, 0)),   # W_lo (broadcast)
        ],
        out_specs=pl.BlockSpec((tm, N_OUT), lambda i: (i, 0)),    # interleaved slab
        compiler_params=pltpu.CompilerParams(
            dimension_semantics=("parallel",),
            vmem_limit_bytes=32 * 1024 * 1024),
    )(lhs, loge_col, w_hi, w_lo)

    # The 130 interleaved columns ARE view_as_real(rfft(.)) with log-energy in
    # the real DC bin: slice off the row padding and bitcast-reshape only.
    # NOTE: the upstream snippet writes X[:, 0, :, 0] = log_e, which is
    # shape-inconsistent when num_frames != n_freq; the documented/intended
    # behavior (energy in the DC bin of every frame) is implemented here.
    return out[:rows].reshape(B, M, N_FREQ, 2)


# ---------------- pure-JAX reference (sanity check) --------------------------
def wav2fft_reference(x):
    x = x.astype(jnp.float32)
    x = x - jnp.mean(x, axis=1, keepdims=True)
    frames_raw = frame_signal(x, N_WIN, N_SHIFT)
    log_e = jnp.log(jnp.sum(frames_raw * frames_raw, axis=-1) + 1e-15)
    x_off = jnp.concatenate([x[:, :1], x[:, :-1]], axis=1)
    x_pre = x - PREEMPH * x_off
    frames = frame_signal(x_pre, N_WIN, N_SHIFT) * povey_window(N_WIN)
    frames = jnp.pad(frames, ((0, 0), (0, 0), (0, FFT_LENGTH - N_WIN)))
    X = jnp.fft.rfft(frames, axis=-1)
    xr = X.real.at[:, :, 0].set(log_e)
    return jnp.stack([xr, X.imag], axis=-1)


if __name__ == "__main__":
    key = jax.random.PRNGKey(0)
    batch, num_samples = 2, 512
    x = jax.random.normal(key, (batch, num_samples), dtype=jnp.float32)

    out = jax.jit(wav2fft)(x)
    out = jax.block_until_ready(out)

    # shape check: (B, num_frames, fft_length//2+1, 2)
    num_frames = 1 + (num_samples - N_WIN) // N_SHIFT
    assert out.shape == (batch, num_frames, N_FREQ, 2), out.shape

    ref = jax.block_until_ready(wav2fft_reference(x))
    assert jnp.allclose(out, ref, rtol=5e-3, atol=5e-3), \
        float(jnp.max(jnp.abs(out - ref)))

    print("KERNEL_OK")
</pallas_src>

<mosaic_0001>
module attributes {stable_mosaic.version = 11 : i64} {
  func.func @wav2fft_kernel(%arg0: i32, %arg1: memref<16x128xbf16, #tpu.memory_space<vmem>>, %arg2: memref<16x1xf32, #tpu.memory_space<vmem>>, %arg3: memref<128x130xbf16, #tpu.memory_space<vmem>>, %arg4: memref<128x130xbf16, #tpu.memory_space<vmem>>, %arg5: memref<16x130xf32, #tpu.memory_space<vmem>>) attributes {dimension_semantics = [#tpu.dimension_semantics<parallel>], iteration_bounds = array<i64: 2>, scalar_prefetch = 0 : i64, scratch_operands = 0 : i64, tpu.core_type = #tpu.core_type<tc>, window_params = [{transform_indices = @transform_0, window_bounds = array<i64: 16, 128>}, {transform_indices = @transform_1, window_bounds = array<i64: 16, 1>}, {pipeline_mode = #tpu.pipeline_mode<synchronous>, transform_indices = @transform_2, window_bounds = array<i64: 128, 130>}, {pipeline_mode = #tpu.pipeline_mode<synchronous>, transform_indices = @transform_3, window_bounds = array<i64: 128, 130>}, {transform_indices = @transform_4, window_bounds = array<i64: 16, 130>}]} {
    %c0 = arith.constant 0 : index
    %c0_0 = arith.constant 0 : index
    %0 = vector.load %arg1[%c0, %c0_0] : memref<16x128xbf16, #tpu.memory_space<vmem>>, vector<16x128xbf16>
    %c0_1 = arith.constant 0 : index
    %c0_2 = arith.constant 0 : index
    %1 = vector.load %arg3[%c0_1, %c0_2] : memref<128x130xbf16, #tpu.memory_space<vmem>>, vector<128x130xbf16>
    %cst = arith.constant dense<0.000000e+00> : vector<16x130xf32>
    %2 = tpu.matmul %0, %1, %cst {dimension_numbers = #tpu.dot_dimension_numbers<[1], [0], [0], [1], [0, 0, 1, 1], [], []>} : vector<16x128xbf16>, vector<128x130xbf16>, vector<16x130xf32> -> vector<16x130xf32>
    %c0_3 = arith.constant 0 : index
    %c0_4 = arith.constant 0 : index
    %3 = vector.load %arg1[%c0_3, %c0_4] : memref<16x128xbf16, #tpu.memory_space<vmem>>, vector<16x128xbf16>
    %c0_5 = arith.constant 0 : index
    %c0_6 = arith.constant 0 : index
    %4 = vector.load %arg4[%c0_5, %c0_6] : memref<128x130xbf16, #tpu.memory_space<vmem>>, vector<128x130xbf16>
    %cst_7 = arith.constant dense<0.000000e+00> : vector<16x130xf32>
    %5 = tpu.matmul %3, %4, %cst_7 {dimension_numbers = #tpu.dot_dimension_numbers<[1], [0], [0], [1], [0, 0, 1, 1], [], []>} : vector<16x128xbf16>, vector<128x130xbf16>, vector<16x130xf32> -> vector<16x130xf32>
    %6 = arith.addf %2, %5 : vector<16x130xf32>
    %7 = tpu.iota {dimensions = array<i32: 1>} : vector<16x130xi32>
    %c0_i32 = arith.constant 0 : i32
    %8 = vector.broadcast %c0_i32 : i32 to vector<16x130xi32>
    %9 = arith.cmpi eq, %7, %8 : vector<16x130xi32>
    %c0_8 = arith.constant 0 : index
    %c0_9 = arith.constant 0 : index
    %10 = vector.load %arg2[%c0_8, %c0_9] : memref<16x1xf32, #tpu.memory_space<vmem>>, vector<16x1xf32>
    %11 = vector.shape_cast %10 : vector<16x1xf32> to vector<16x1xf32>
    %12 = vector.broadcast %11 : vector<16x1xf32> to vector<16x130xf32>
    %13 = arith.select %9, %12, %6 : vector<16x130xi1>, vector<16x130xf32>
    %c0_10 = arith.constant 0 : index
    %c0_11 = arith.constant 0 : index
    %14 = vector.load %arg5[%c0_10, %c0_11] : memref<16x130xf32, #tpu.memory_space<vmem>>, vector<16x130xf32>
    tpu.vector_store %arg5[%c0_10, %c0_11], %13 {strides = array<i32>} : memref<16x130xf32, #tpu.memory_space<vmem>>, vector<16x130xf32>,
    return
  }
  func.func @transform_0(%arg0: i32) -> (i32, i32) {
    %c0_i32 = arith.constant 0 : i32
    %c0_i32_0 = arith.constant 0 : i32
    return %arg0, %c0_i32 : i32, i32
  }
  func.func @transform_1(%arg0: i32) -> (i32, i32) {
    %c0_i32 = arith.constant 0 : i32
    %c0_i32_0 = arith.constant 0 : i32
    return %arg0, %c0_i32 : i32, i32
  }
  func.func @transform_2(%arg0: i32) -> (i32, i32) {
    %c0_i32 = arith.constant 0 : i32
    %c0_i32_0 = arith.constant 0 : i32
    %c0_i32_1 = arith.constant 0 : i32
    return %c0_i32, %c0_i32_0 : i32, i32
  }
  func.func @transform_3(%arg0: i32) -> (i32, i32) {
    %c0_i32 = arith.constant 0 : i32
    %c0_i32_0 = arith.constant 0 : i32
    %c0_i32_1 = arith.constant 0 : i32
    return %c0_i32, %c0_i32_0 : i32, i32
  }
  func.func @transform_4(%arg0: i32) -> (i32, i32) {
    %c0_i32 = arith.constant 0 : i32
    %c0_i32_0 = arith.constant 0 : i32
    return %arg0, %c0_i32 : i32, i32
  }
}

</mosaic_0001>

<llo_original>
// kernel: wav2fft.1
$region0: #{wav2fft.1}
  #allocation0 [shape = 'u32[]', space=smem, size = 0x4, offset = 0x4, fixed_abs, tag = 'smem constant byte address 0x4 - core index']
  #allocation1 [shape = 'u32[72,128]{1,0:T(1,128)}', space=vmem, size = 0x9000, scoped, tag = 'internal scratch']
  %s0 = inlined_call_operand.vmem [shape: bf16[32,128], index: 0, kind: input, shape index: {}]
  %s1 = inlined_call_operand.vmem [shape: f32[32,1], index: 1, kind: input, shape index: {}]
  %s2 = inlined_call_operand.vmem [shape: bf16[128,130], index: 2, kind: input, shape index: {}]
  %s3 = inlined_call_operand.vmem [shape: bf16[128,130], index: 3, kind: input, shape index: {}]
  %s4 = inlined_call_operand.vmem [shape: f32[32,130], index: 4, kind: output, shape index: {}]
  %s5 = sld [smem:[#allocation0]]
  $region49: #{wav2fft.1} parent=0
    _
  %s7 = ssub.s32 1, %s5
  %s8 = scalar_select 0, %s7, %s5
  loop: start=0, step=1, limit=4
  $region2: #{wav2fft.1} parent=0 // loop_pre_header
    _
  $region3: #{wav2fft.1} parent=0 // loop_header
    %s10 = sphi 0, %s14
    %p11 = scmp.ge.s32.totalorder %s10, 4
    %s20 = sphi 0, %s22
    %s23 = sphi 0, %s20
    %s24 = sphi 0, %s23
    %s40 = sphi 0, %s24
    %s46 = sphi 0, %s48
    %s49 = sphi 0, %s46
    %s50 = sphi 0, %s49
    %s66 = sphi 0, %s50
    %s70 = sphi 0, %s70
    %s72 = sphi 0, %s70
    %s73 = sphi 0, %s72
    %s87 = sphi 0, %s73
    %s91 = sphi 0, %s91
    %s93 = sphi 0, %s91
    %s94 = sphi 0, %s93
    %s108 = sphi 0, %s94
    %s114 = sphi 0, %s116
    %s117 = sphi 0, %s114
    %s118 = sphi 0, %s117
    %s134 = sphi 0, %s118
  $region4: #{wav2fft.1} parent=0 // loop_header_branch
    %13 = sbr.rel (%p11) target = $region8
  $region5: #{wav2fft.1} parent=0 // loop_body
    %s15 = ssub.s32 %s10, 1
    %s16 = ssub.s32 %s10, 2
    %s17 = sadd.s32 %s10, 1
    %s18 = ssub.s32 %s10, %s17
    %p19 = scmp.eq.s32.totalorder %s18, 0
    %s21 = sadd.s32 %s20, 1
    %s22 = scalar_select %p19, %s20, %s21
    %p25 = pneg %p19
    %p26 = scmp.eq.s32.totalorder %s10, 1
    %p27 = por %p25, %p26
    %p28 = scmp.ne.s32.totalorder %s20, %s23
    %p29 = scmp.eq.s32.totalorder %s10, 0
    %p30 = por %p28, %p29
    %p31 = scmp.ne.s32.totalorder %s20, %s23
    %p32 = scmp.eq.s32.totalorder %s15, 1
    %p33 = por %p31, %p32
    %p34 = scmp.ne.s32.totalorder %s23, %s24
    %p35 = scmp.eq.s32.totalorder %s15, 0
    %p36 = por %p34, %p35
    %p37 = scmp.ne.s32.totalorder %s23, %s24
    %p38 = scmp.eq.s32.totalorder %s16, 1
    %p39 = por %p37, %p38
    %p41 = scmp.ne.s32.totalorder %s24, %s40
    %p42 = scmp.eq.s32.totalorder %s16, 0
    %p43 = por %p41, %p42
    %s44 = ssub.s32 %s10, %s17
    %p45 = scmp.eq.s32.totalorder %s44, 0
    %s47 = sadd.s32 %s46, 1
    %s48 = scalar_select %p45, %s46, %s47
    %p51 = pneg %p45
    %p52 = scmp.eq.s32.totalorder %s10, 1
    %p53 = por %p51, %p52
    %p54 = scmp.ne.s32.totalorder %s46, %s49
    %p55 = scmp.eq.s32.totalorder %s10, 0
    %p56 = por %p54, %p55
    %p57 = scmp.ne.s32.totalorder %s46, %s49
    %p58 = scmp.eq.s32.totalorder %s15, 1
    %p59 = por %p57, %p58
    %p60 = scmp.ne.s32.totalorder %s49, %s50
    %p61 = scmp.eq.s32.totalorder %s15, 0
    %p62 = por %p60, %p61
    %p63 = scmp.ne.s32.totalorder %s49, %s50
    %p64 = scmp.eq.s32.totalorder %s16, 1
    %p65 = por %p63, %p64
    %p67 = scmp.ne.s32.totalorder %s50, %s66
    %p68 = scmp.eq.s32.totalorder %s16, 0
    %p69 = por %p67, %p68
    %s71 = sadd.s32 %s70, 1
    %p74 = scmp.eq.s32.totalorder %s10, 1
    %p75 = scmp.ne.s32.totalorder %s70, %s72
    %p76 = scmp.eq.s32.totalorder %s10, 0
    %p77 = por %p75, %p76
    %p78 = scmp.ne.s32.totalorder %s70, %s72
    %p79 = scmp.eq.s32.totalorder %s15, 1
    %p80 = por %p78, %p79
    %p81 = scmp.ne.s32.totalorder %s72, %s73
    %p82 = scmp.eq.s32.totalorder %s15, 0
    %p83 = por %p81, %p82
    %p84 = scmp.ne.s32.totalorder %s72, %s73
    %p85 = scmp.eq.s32.totalorder %s16, 1
    %p86 = por %p84, %p85
    %p88 = scmp.ne.s32.totalorder %s73, %s87
    %p89 = scmp.eq.s32.totalorder %s16, 0
    %p90 = por %p88, %p89
    %s92 = sadd.s32 %s91, 1
    %p95 = scmp.eq.s32.totalorder %s10, 1
    %p96 = scmp.ne.s32.totalorder %s91, %s93
    %p97 = scmp.eq.s32.totalorder %s10, 0
    %p98 = por %p96, %p97
    %p99 = scmp.ne.s32.totalorder %s91, %s93
    %p100 = scmp.eq.s32.totalorder %s15, 1
    %p101 = por %p99, %p100
    %p102 = scmp.ne.s32.totalorder %s93, %s94
    %p103 = scmp.eq.s32.totalorder %s15, 0
    %p104 = por %p102, %p103
    %p105 = scmp.ne.s32.totalorder %s93, %s94
    %p106 = scmp.eq.s32.totalorder %s16, 1
    %p107 = por %p105, %p106
    %p109 = scmp.ne.s32.totalorder %s94, %s108
    %p110 = scmp.eq.s32.totalorder %s16, 0
    %p111 = por %p109, %p110
    %s112 = ssub.s32 %s10, %s17
    %p113 = scmp.eq.s32.totalorder %s112, 0
    %s115 = sadd.s32 %s114, 1
    %s116 = scalar_select %p113, %s114, %s115
    %p119 = pneg %p113
    %p120 = scmp.eq.s32.totalorder %s10, 1
    %p121 = por %p119, %p120
    %p122 = scmp.ne.s32.totalorder %s114, %s117
    %p123 = scmp.eq.s32.totalorder %s10, 0
    %p124 = por %p122, %p123
    %p125 = scmp.ne.s32.totalorder %s114, %s117
    %p126 = scmp.eq.s32.totalorder %s15, 1
    %p127 = por %p125, %p126
    %p128 = scmp.ne.s32.totalorder %s117, %s118
    %p129 = scmp.eq.s32.totalorder %s15, 0
    %p130 = por %p128, %p129
    %p131 = scmp.ne.s32.totalorder %s117, %s118
    %p132 = scmp.eq.s32.totalorder %s16, 1
    %p133 = por %p131, %p132
    %p135 = scmp.ne.s32.totalorder %s118, %s134
    %p136 = scmp.eq.s32.totalorder %s16, 0
    %p137 = por %p135, %p136
    %p138 = scmp.le.s32.totalorder 1, %s10
    %p139 = scmp.lt.s32.totalorder %s10, 3
    %p140 = pnand %p138, %p139
    %p141 = pneg %p140
    // Predicated region
    $region9: #{wav2fft.1} parent=5 // pred_check
      _
    $region10: #{wav2fft.1} parent=5 // pred_check_branch
      %143 = sbr.rel (%p140) target = $region12
    $region11: #{wav2fft.1} parent=5 // pred_region
      %s144 = ssub.s32 %s10, 1
      // Predicated region
      $region13: #{wav2fft.1} parent=11 // pred_check
        %p145 = pneg %p83
      $region14: #{wav2fft.1} parent=11 // pred_check_branch
        %147 = sbr.rel (%p145) target = $region16
      $region15: #{wav2fft.1} parent=11 // pred_region
        _
      $region16: #{wav2fft.1} parent=11 // pred_fallthru
        _
      // Predicated region
      $region17: #{wav2fft.1} parent=11 // pred_check
        %p148 = pneg %p104
      $region18: #{wav2fft.1} parent=11 // pred_check_branch
        %150 = sbr.rel (%p148) target = $region20
      $region19: #{wav2fft.1} parent=11 // pred_region
        _
      $region20: #{wav2fft.1} parent=11 // pred_fallthru
        _
    $region12: #{wav2fft.1} parent=5 // pred_fallthru
      _
    %p151 = scmp.lt.s32.totalorder %s10, 2
    // Predicated region
    $region21: #{wav2fft.1} parent=5 // pred_check
      %p152 = pneg %p151
    $region22: #{wav2fft.1} parent=5 // pred_check_branch
      %154 = sbr.rel (%p152) target = $region24
    $region23: #{wav2fft.1} parent=5 // pred_region
      // Predicated region
      $region25: #{wav2fft.1} parent=23 // pred_check
        %p155 = pneg %p30
      $region26: #{wav2fft.1} parent=23 // pred_check_branch
        %157 = sbr.rel (%p155) target = $region28
      $region27: #{wav2fft.1} parent=23 // pred_region
        %s158 = smul.u32 2, %s10
        %p159 = scmp.lt.s32.totalorder %s158, 3
        %s160 = scalar_select %p159, %s158, 3
        %s161 = smul.addr %s160, 4
        %s162 = scalar_lea.vmem %s0, %s161
        %s163 = smul.u32 2, %s10
      $region28: #{wav2fft.1} parent=23 // pred_fallthru
        _
      // Predicated region
      $region29: #{wav2fft.1} parent=23 // pred_check
        %p164 = pneg %p56
      $region30: #{wav2fft.1} parent=23 // pred_check_branch
        %166 = sbr.rel (%p164) target = $region32
      $region31: #{wav2fft.1} parent=23 // pred_region
        %s167 = smul.u32 2, %s10
        %p168 = scmp.lt.s32.totalorder %s167, 3
        %s169 = scalar_select %p168, %s167, 3
        %s170 = smul.addr %s169, 8
        %s171 = scalar_lea.vmem %s1, %s170
        %s172 = smul.u32 2, %s10
      $region32: #{wav2fft.1} parent=23 // pred_fallthru
        _
    $region24: #{wav2fft.1} parent=5 // pred_fallthru
      _
    %p173 = scmp.le.s32.totalorder 1, %s10
    %p174 = scmp.lt.s32.totalorder %s10, 3
    %p175 = pnand %p173, %p174
    %p176 = pneg %p175
    // Predicated region
    $region33: #{wav2fft.1} parent=5 // pred_check
      _
    $region34: #{wav2fft.1} parent=5 // pred_check_branch
      %178 = sbr.rel (%p175) target = $region36
    $region35: #{wav2fft.1} parent=5 // pred_region
      %s179 = ssub.s32 %s10, 1
      %s180 = smul.u32 2, %s15
      %p181 = scmp.lt.s32.totalorder %s180, 3
      %s182 = scalar_select %p181, %s180, 3
      %s183 = smul.addr %s182, 4
      %s184 = scalar_lea.vmem %s0, %s183
      %p185 = pneg %p36
      %p186 = pneg %p33
      %s187 = smul.u32 2, %s15
      %p188 = scmp.lt.s32.totalorder %s187, 3
      %s189 = scalar_select %p188, %s187, 3
      %s190 = smul.addr %s189, 8
      %s191 = scalar_lea.vmem %s1, %s190
      %p192 = pneg %p62
      %p193 = pneg %p59
      %p194 = pneg %p83
      %p195 = pneg %p80
      %p196 = pneg %p104
      %p197 = pneg %p101
      %p198 = pneg %p130
      %p199 = pneg %p127
      %s200 = smul.u32 2, %s15
      %p201 = scmp.lt.s32.totalorder %s200, 3
      %s202 = scalar_select %p201, %s200, 3
      %s203 = smul.addr %s202, 2
      %s204 = smul.addr %s203, 8
      %s205 = scalar_lea.vmem %s4, %s204
      %s206 = smul.u32 2, %s15
      %p207 = scmp.lt.s32.totalorder %s206, 3
      %s208 = scalar_select %p207, %s206, 3
      %s209 = smul.addr %s208, 4
      %s210 = scalar_lea.vmem %s0, %s209
      %s211 = smul.u32 2, %s15
      %s212 = smul.u32 2, %s15
      %p213 = scmp.lt.s32.totalorder %s212, 3
      %s214 = scalar_select %p213, %s212, 3
      %s215 = smul.addr %s214, 8
      %s216 = scalar_lea.vmem %s1, %s215
      %s217 = smul.u32 2, %s15
      %s218 = smul.u32 2, %s15
      %p219 = scmp.lt.s32.totalorder %s218, 3
      %s220 = scalar_select %p219, %s218, 3
      %s221 = smul.addr %s220, 2
      %s222 = smul.addr %s221, 8
      %s223 = scalar_lea.vmem %s4, %s222
      %s224 = smul.u32 2, %s15
      %v225 = vld [vmem:[%s210] sm:$0xf]
      %v226 = vld [vmem:[%s210 + $0x4] sm:$0xf]
      %v227 = vld [vmem:[%s2] sm:$0xff]
      %v228 = vld [vmem:[%s2 + $0x8] sm:$0xff]
      %v229 = vld [vmem:[%s2 + $0x10] sm:$0xff]
      %v230 = vld [vmem:[%s2 + $0x18] sm:$0xff]
      %v231 = vld [vmem:[%s2 + $0x20] sm:$0xff]
      %v232 = vld [vmem:[%s2 + $0x28] sm:$0xff]
      %v233 = vld [vmem:[%s2 + $0x30] sm:$0xff]
      %v234 = vld [vmem:[%s2 + $0x38] sm:$0xff]
      %v235 = vld [vmem:[%s2 + $0x40] sm:$0xff]
      %v236 = vld [vmem:[%s2 + $0x48] sm:$0xff]
      %v237 = vld [vmem:[%s2 + $0x50] sm:$0xff]
      %v238 = vld [vmem:[%s2 + $0x58] sm:$0xff]
      %v239 = vld [vmem:[%s2 + $0x60] sm:$0xff]
      %v240 = vld [vmem:[%s2 + $0x68] sm:$0xff]
      %v241 = vld [vmem:[%s2 + $0x70] sm:$0xff]
      %v242 = vld [vmem:[%s2 + $0x78] sm:$0xff]
      %v243 = vld [vmem:[%s3] sm:$0xff]
      %v244 = vld [vmem:[%s3 + $0x8] sm:$0xff]
      %v245 = vld [vmem:[%s3 + $0x10] sm:$0xff]
      %v246 = vld [vmem:[%s3 + $0x18] sm:$0xff]
      %v247 = vld [vmem:[%s3 + $0x20] sm:$0xff]
      %v248 = vld [vmem:[%s3 + $0x28] sm:$0xff]
      %v249 = vld [vmem:[%s3 + $0x30] sm:$0xff]
      %v250 = vld [vmem:[%s3 + $0x38] sm:$0xff]
      %v251 = vld [vmem:[%s3 + $0x40] sm:$0xff]
      %v252 = vld [vmem:[%s3 + $0x48] sm:$0xff]
      %v253 = vld [vmem:[%s3 + $0x50] sm:$0xff]
      %v254 = vld [vmem:[%s3 + $0x58] sm:$0xff]
      %v255 = vld [vmem:[%s3 + $0x60] sm:$0xff]
      %v256 = vld [vmem:[%s3 + $0x68] sm:$0xff]
      %v257 = vld [vmem:[%s3 + $0x70] sm:$0xff]
      %v258 = vld [vmem:[%s3 + $0x78] sm:$0xff]
      %v261 = vunpack.c.l.b16 %v225
      %v262 = vunpack.c.l.b16 %v226
      %v263 = vpack.c.b16 %v262, %v261
      %v281 = vunpack.c.l.b16 %v243
      %v282 = vunpack.c.h.b16 %v243
      %v283 = vunpack.c.l.b16 %v244
      %v284 = vunpack.c.h.b16 %v244
      %v285 = vunpack.c.l.b16 %v245
      %v286 = vunpack.c.h.b16 %v245
      %v287 = vunpack.c.l.b16 %v246
      %v288 = vunpack.c.h.b16 %v246
      %v289 = vunpack.c.l.b16 %v247
      %v290 = vunpack.c.h.b16 %v247
      %v291 = vunpack.c.l.b16 %v248
      %v292 = vunpack.c.h.b16 %v248
      %v293 = vunpack.c.l.b16 %v249
      %v294 = vunpack.c.h.b16 %v249
      %v295 = vunpack.c.l.b16 %v250
      %v296 = vunpack.c.h.b16 %v250
      %v297 = vunpack.c.l.b16 %v251
      %v298 = vunpack.c.h.b16 %v251
      %v299 = vunpack.c.l.b16 %v252
      %v300 = vunpack.c.h.b16 %v252
      %v301 = vunpack.c.l.b16 %v253
      %v302 = vunpack.c.h.b16 %v253
      %v303 = vunpack.c.l.b16 %v254
      %v304 = vunpack.c.h.b16 %v254
      %v305 = vunpack.c.l.b16 %v255
      %v306 = vunpack.c.h.b16 %v255
      %v307 = vunpack.c.l.b16 %v256
      %v308 = vunpack.c.h.b16 %v256
      %v309 = vunpack.c.l.b16 %v257
      %v310 = vunpack.c.h.b16 %v257
      %v311 = vunpack.c.l.b16 %v258
      %v312 = vunpack.c.h.b16 %v258
      %v313 = vpack.c.b16 %v283, %v281
      %v314 = vpack.c.b16 %v284, %v282
      %v315 = vpack.c.b16 %v287, %v285
      %v316 = vpack.c.b16 %v288, %v286
      %v317 = vpack.c.b16 %v291, %v289
      %v318 = vpack.c.b16 %v292, %v290
      %v319 = vpack.c.b16 %v295, %v293
      %v320 = vpack.c.b16 %v296, %v294
      %v321 = vpack.c.b16 %v299, %v297
      %v322 = vpack.c.b16 %v300, %v298
      %v323 = vpack.c.b16 %v303, %v301
      %v324 = vpack.c.b16 %v304, %v302
      %v325 = vpack.c.b16 %v307, %v305
      %v326 = vpack.c.b16 %v308, %v306
      %v327 = vpack.c.b16 %v311, %v309
      %v328 = vpack.c.b16 %v312, %v310
      %345 = vmatpush.bf16.msra.mxu0 %v327
      %346 = vmatpush.bf16.msra.mxu0 %v325
      %347 = vmatpush.bf16.msra.mxu0 %v323
      %348 = vmatpush.bf16.msra.mxu0 %v321
      %349 = vmatpush.bf16.msra.mxu0 %v319
      %350 = vmatpush.bf16.msra.mxu0 %v317
      %351 = vmatpush.bf16.msra.mxu0 %v315
      %352 = vmatpush.bf16.msra.mxu0 %v313
      %353 = vmatmul.bf16.gmra.mxu0 %v263
      %v354 = vpop.f32.mrf.mxu0
      %v355 = vadd.f32 0.0, %v354
      %v356 = vpop.f32.mrf.mxu0
      %v357 = vadd.f32 0.0, %v356
      %358 = vdwg.mxu0
      %359 = vmatpush.bf16.msra.mxu0 %v328
      %360 = vmatpush.bf16.msra.mxu0 %v326
      %361 = vmatpush.bf16.msra.mxu0 %v324
      %362 = vmatpush.bf16.msra.mxu0 %v322
      %363 = vmatpush.bf16.msra.mxu0 %v320
      %364 = vmatpush.bf16.msra.mxu0 %v318
      %365 = vmatpush.bf16.msra.mxu0 %v316
      %366 = vmatpush.bf16.msra.mxu0 %v314
      %367 = vmatmul.bf16.gmra.mxu0 %v263
      %v368 = vpop.f32.mrf.mxu0
      %v369 = vadd.f32 0.0, %v368
      %v370 = vpop.f32.mrf.mxu0
      %v371 = vadd.f32 0.0, %v370
      %372 = vdwg.mxu0
      %v389 = vunpack.c.l.b16 %v227
      %v390 = vunpack.c.h.b16 %v227
      %v391 = vunpack.c.l.b16 %v228
      %v392 = vunpack.c.h.b16 %v228
      %v393 = vunpack.c.l.b16 %v229
      %v394 = vunpack.c.h.b16 %v229
      %v395 = vunpack.c.l.b16 %v230
      %v396 = vunpack.c.h.b16 %v230
      %v397 = vunpack.c.l.b16 %v231
      %v398 = vunpack.c.h.b16 %v231
      %v399 = vunpack.c.l.b16 %v232
      %v400 = vunpack.c.h.b16 %v232
      %v401 = vunpack.c.l.b16 %v233
      %v402 = vunpack.c.h.b16 %v233
      %v403 = vunpack.c.l.b16 %v234
      %v404 = vunpack.c.h.b16 %v234
      %v405 = vunpack.c.l.b16 %v235
      %v406 = vunpack.c.h.b16 %v235
      %v407 = vunpack.c.l.b16 %v236
      %v408 = vunpack.c.h.b16 %v236
      %v409 = vunpack.c.l.b16 %v237
      %v410 = vunpack.c.h.b16 %v237
      %v411 = vunpack.c.l.b16 %v238
      %v412 = vunpack.c.h.b16 %v238
      %v413 = vunpack.c.l.b16 %v239
      %v414 = vunpack.c.h.b16 %v239
      %v415 = vunpack.c.l.b16 %v240
      %v416 = vunpack.c.h.b16 %v240
      %v417 = vunpack.c.l.b16 %v241
      %v418 = vunpack.c.h.b16 %v241
      %v419 = vunpack.c.l.b16 %v242
      %v420 = vunpack.c.h.b16 %v242
      %v421 = vpack.c.b16 %v391, %v389
      %v422 = vpack.c.b16 %v392, %v390
      %v423 = vpack.c.b16 %v395, %v393
      %v424 = vpack.c.b16 %v396, %v394
      %v425 = vpack.c.b16 %v399, %v397
      %v426 = vpack.c.b16 %v400, %v398
      %v427 = vpack.c.b16 %v403, %v401
      %v428 = vpack.c.b16 %v404, %v402
      %v429 = vpack.c.b16 %v407, %v405
      %v430 = vpack.c.b16 %v408, %v406
      %v431 = vpack.c.b16 %v411, %v409
      %v432 = vpack.c.b16 %v412, %v410
      %v433 = vpack.c.b16 %v415, %v413
      %v434 = vpack.c.b16 %v416, %v414
      %v435 = vpack.c.b16 %v419, %v417
      %v436 = vpack.c.b16 %v420, %v418
      %453 = vmatpush.bf16.msra.mxu0 %v435
      %454 = vmatpush.bf16.msra.mxu0 %v433
      %455 = vmatpush.bf16.msra.mxu0 %v431
      %456 = vmatpush.bf16.msra.mxu0 %v429
      %457 = vmatpush.bf16.msra.mxu0 %v427
      %458 = vmatpush.bf16.msra.mxu0 %v425
      %459 = vmatpush.bf16.msra.mxu0 %v423
      %460 = vmatpush.bf16.msra.mxu0 %v421
      %461 = vmatmul.bf16.gmra.mxu0 %v263
      %v462 = vpop.f32.mrf.mxu0
      %v463 = vadd.f32 %v355, %v462
      %v464 = vpop.f32.mrf.mxu0
      %v465 = vadd.f32 %v357, %v464
      %466 = vdwg.mxu0
      %467 = vmatpush.bf16.msra.mxu0 %v436
      %468 = vmatpush.bf16.msra.mxu0 %v434
      %469 = vmatpush.bf16.msra.mxu0 %v432
      %470 = vmatpush.bf16.msra.mxu0 %v430
      %471 = vmatpush.bf16.msra.mxu0 %v428
      %472 = vmatpush.bf16.msra.mxu0 %v426
      %473 = vmatpush.bf16.msra.mxu0 %v424
      %474 = vmatpush.bf16.msra.mxu0 %v422
      %475 = vmatmul.bf16.gmra.mxu0 %v263
      %v476 = vpop.f32.mrf.mxu0
      %v477 = vadd.f32 %v369, %v476
      %v478 = vpop.f32.mrf.mxu0
      %v479 = vadd.f32 %v371, %v478
      %480 = vdwg.mxu0
      %v481 = vlaneseq
      %v482 = vand.u32 %v481, 127
      %v483 = vadd.s32 %v482, 128
      %vm484 = vcmp.eq.s32.totalorder %v482, 0
      %vm485 = vcmp.eq.s32.totalorder %v483, 0
      %v486 = vld [vmem:[%s216] sm:$0xff]
      %v487 = vld [vmem:[%s216 + $0x8] sm:$0xff]
      %489 = vset.pattern.permute.xlu0 0
      %490 = vperm.xlu0 %489, %v486
      %v491 = vpop.permute.xlu0 %490
      %494 = vset.pattern.permute.xlu0 0
      %495 = vperm.xlu0 %494, %v487
      %v496 = vpop.permute.xlu0 %495
      %v498 = vsel %vm484, %v491, %v463
      %v499 = vsel %vm485, %v491, %v477
      %v500 = vsel %vm484, %v496, %v465
      %v501 = vsel %vm485, %v496, %v479
      %502 = vst [vmem:[%s223] sm:$0xff] %v498
      %vm503 = vcmask 15360
      %504 = vst.msk [vmem:[%s223 + $0x8] sm:$0xff] %vm503, %v499
      %505 = vst [vmem:[%s223 + $0x10] sm:$0xff] %v500
      %506 = vst.msk [vmem:[%s223 + $0x18] sm:$0xff] %vm503, %v501
      %s507 = smul.u32 2, %s15
      %p508 = scmp.lt.s32.totalorder %s507, 3
      %s509 = scalar_select %p508, %s507, 3
      %s510 = smul.addr %s509, 2
      %s511 = smul.addr %s510, 8
      %s512 = scalar_lea.vmem %s4, %s511
      // Predicated region
      $region37: #{wav2fft.1} parent=35 // pred_check
        %p513 = pneg %p127
      $region38: #{wav2fft.1} parent=35 // pred_check_branch
        %515 = sbr.rel (%p513) target = $region40
      $region39: #{wav2fft.1} parent=35 // pred_region
        %s516 = smul.u32 2, %s15
      $region40: #{wav2fft.1} parent=35 // pred_fallthru
        _
    $region36: #{wav2fft.1} parent=5 // pred_fallthru
      _
    %p517 = scmp.le.s32.totalorder 2, %s10
    // Predicated region
    $region41: #{wav2fft.1} parent=5 // pred_check
      %p518 = pneg %p517
    $region42: #{wav2fft.1} parent=5 // pred_check_branch
      %520 = sbr.rel (%p518) target = $region44
    $region43: #{wav2fft.1} parent=5 // pred_region
      %s521 = ssub.s32 %s10, 2
      // Predicated region
      $region45: #{wav2fft.1} parent=43 // pred_check
        %p522 = pneg %p133
      $region46: #{wav2fft.1} parent=43 // pred_check_branch
        %524 = sbr.rel (%p522) target = $region48
      $region47: #{wav2fft.1} parent=43 // pred_region
        %s525 = smul.u32 2, %s16
        %p526 = scmp.lt.s32.totalorder %s525, 3
        %s527 = scalar_select %p526, %s525, 3
        %s528 = smul.addr %s527, 2
        %s529 = smul.addr %s528, 8
        %s530 = scalar_lea.vmem %s4, %s529
      $region48: #{wav2fft.1} parent=43 // pred_fallthru
        _
    $region44: #{wav2fft.1} parent=5 // pred_fallthru
      _
  $region6: #{wav2fft.1} parent=0 // loop_footer
    %s14 = sadd.s32 1, %s10
  $region7: #{wav2fft.1} parent=0 // loop_footer_branch
    %9 = sbr.rel target = $region3
  $region8: #{wav2fft.1} parent=0 // loop_exit
    _

</llo_original>
